<compile_context>
chip_gen: v6e
topology: v6e:2x2x1
jax: 0.10.0
libtpu: 0.0.40
codegen_flags: <defaults>
</compile_context>

<pallas_src>
import jax
import jax.numpy as jnp
from jax.experimental import pallas as pl
from jax.experimental.pallas import tpu as pltpu


def _round_up(n, m):
    return ((n + m - 1) // m) * m


def _mlp_kernel(x_ref, w1_ref, b1_ref, w2_ref, b2_ref, w3_ref, b3_ref, o_ref):
    # Feature-major tiles: x (11, TB) bf16, weights (out, in) bf16,
    # biases (out, 1) f32, output (8, TB) f32.
    x = x_ref[...]
    h1 = jnp.dot(w1_ref[...], x, preferred_element_type=jnp.float32) + b1_ref[...]
    h1 = jnp.maximum(h1, 0.0).astype(jnp.bfloat16)
    h2 = jnp.dot(w2_ref[...], h1, preferred_element_type=jnp.float32) + b2_ref[...]
    h2 = jnp.maximum(h2, 0.0).astype(jnp.bfloat16)
    o_ref[...] = (
        jnp.dot(w3_ref[...], h2, preferred_element_type=jnp.float32) + b3_ref[...]
    )


@jax.jit
def net_forward(x, params):
    """x: (B, 11) float32 (PyTorch (N, in_features) convention).

    params: PyTorch-native layout — w* is (out, in) f32, b* is (out,) f32.
    Returns (B, 6) float32, matching Net.forward.
    """
    B, in_dim = x.shape
    d1 = params["w1"].shape[0]          # 64
    d2 = params["w2"].shape[0]          # 32
    out_dim = params["w3"].shape[0]     # 6
    out_pad = _round_up(out_dim, 8)     # 8: full-sublane output tile

    # Batch tile on the lane axis: multiple of 128, capped at 1024 so the
    # double-buffered activation tiles stay tiny on every chip generation.
    TB = min(1024, _round_up(B, 128))
    B_pad = _round_up(B, TB)

    # Feature-major, lane-dense, bf16 input slab (11, B_pad).
    xt = jnp.transpose(x.astype(jnp.bfloat16))
    if B_pad != B:
        xt = jnp.pad(xt, ((0, 0), (0, B_pad - B)))

    w1 = params["w1"].astype(jnp.bfloat16)                  # (64, 11)
    w2 = params["w2"].astype(jnp.bfloat16)                  # (32, 64)
    w3 = params["w3"].astype(jnp.bfloat16)                  # (6, 32)
    b1 = params["b1"].reshape(-1, 1).astype(jnp.float32)    # (64, 1)
    b2 = params["b2"].reshape(-1, 1).astype(jnp.float32)    # (32, 1)
    b3 = params["b3"].reshape(-1, 1).astype(jnp.float32)    # (6, 1)
    if out_pad != out_dim:
        w3 = jnp.pad(w3, ((0, out_pad - out_dim), (0, 0)))  # (8, 32)
        b3 = jnp.pad(b3, ((0, out_pad - out_dim), (0, 0)))  # (8, 1)

    def pinned(shape):  # weight/bias blocks: same block every step -> resident
        return pl.BlockSpec(shape, lambda i: (0, 0))

    out = pl.pallas_call(
        _mlp_kernel,
        out_shape=jax.ShapeDtypeStruct((out_pad, B_pad), jnp.float32),
        grid_spec=pltpu.PrefetchScalarGridSpec(
            num_scalar_prefetch=0,
            grid=(B_pad // TB,),
            in_specs=[
                pl.BlockSpec((in_dim, TB), lambda i: (0, i)),  # x: streamed
                pinned((d1, in_dim)),                           # w1
                pinned((d1, 1)),                                # b1
                pinned((d2, d1)),                               # w2
                pinned((d2, 1)),                                # b2
                pinned((out_pad, d2)),                          # w3 (padded)
                pinned((out_pad, 1)),                           # b3 (padded)
            ],
            out_specs=pl.BlockSpec((out_pad, TB), lambda i: (0, i)),
        ),
        compiler_params=pltpu.CompilerParams(
            dimension_semantics=("parallel",),
        ),
    )(xt, w1, b1, w2, b2, w3, b3)

    return jnp.transpose(out[:out_dim, :B])                  # (B, 6)


def init_params(key):
    """Deterministic synthetic init matching nn.Linear (PyTorch-native shapes)."""
    ks = jax.random.split(key, 6)

    def linear(kw, kb, fan_in, fan_out):
        bound = 1.0 / jnp.sqrt(fan_in)
        w = jax.random.uniform(kw, (fan_out, fan_in), jnp.float32, -bound, bound)
        b = jax.random.uniform(kb, (fan_out,), jnp.float32, -bound, bound)
        return w, b

    w1, b1 = linear(ks[0], ks[1], 11, 64)
    w2, b2 = linear(ks[2], ks[3], 64, 32)
    w3, b3 = linear(ks[4], ks[5], 32, 6)
    return {"w1": w1, "b1": b1, "w2": w2, "b2": b2, "w3": w3, "b3": b3}


def net_forward_ref(x, params):
    """Plain-JAX f32 reference (identical math to the PyTorch module)."""
    h1 = jnp.maximum(x @ params["w1"].T + params["b1"], 0.0)
    h2 = jnp.maximum(h1 @ params["w2"].T + params["b2"], 0.0)
    return h2 @ params["w3"].T + params["b3"]


if __name__ == "__main__":
    key = jax.random.PRNGKey(0)
    k_params, k_x1, k_x2 = jax.random.split(key, 3)
    params = init_params(k_params)

    # Small acting-path batch: B=8, state dim=11.
    x_small = jax.random.normal(k_x1, (8, 11), jnp.float32)
    out_small = jax.block_until_ready(net_forward(x_small, params))
    ref_small = net_forward_ref(x_small, params)
    assert out_small.shape == (8, 6)
    assert jnp.allclose(out_small, ref_small, atol=5e-2, rtol=5e-2), float(
        jnp.max(jnp.abs(out_small - ref_small))
    )

    # Larger replay-style batch that exercises the padded batch grid.
    x_big = jax.random.normal(k_x2, (1000, 11), jnp.float32)
    out_big = jax.block_until_ready(net_forward(x_big, params))
    ref_big = net_forward_ref(x_big, params)
    assert out_big.shape == (1000, 6)
    assert jnp.allclose(out_big, ref_big, atol=5e-2, rtol=5e-2), float(
        jnp.max(jnp.abs(out_big - ref_big))
    )

    print("KERNEL_OK")
</pallas_src>

<mosaic_0001>
module attributes {stable_mosaic.version = 11 : i64} {
  func.func @_mlp_kernel(%arg0: i32, %arg1: memref<11x128xbf16, #tpu.memory_space<vmem>>, %arg2: memref<64x11xbf16, #tpu.memory_space<vmem>>, %arg3: memref<64x1xf32, #tpu.memory_space<vmem>>, %arg4: memref<32x64xbf16, #tpu.memory_space<vmem>>, %arg5: memref<32x1xf32, #tpu.memory_space<vmem>>, %arg6: memref<8x32xbf16, #tpu.memory_space<vmem>>, %arg7: memref<8x1xf32, #tpu.memory_space<vmem>>, %arg8: memref<8x128xf32, #tpu.memory_space<vmem>>) attributes {dimension_semantics = [#tpu.dimension_semantics<parallel>], iteration_bounds = array<i64: 1>, scalar_prefetch = 0 : i64, scratch_operands = 0 : i64, tpu.core_type = #tpu.core_type<tc>, window_params = [{transform_indices = @transform_0, window_bounds = array<i64: 11, 128>}, {pipeline_mode = #tpu.pipeline_mode<synchronous>, transform_indices = @transform_1, window_bounds = array<i64: 64, 11>}, {pipeline_mode = #tpu.pipeline_mode<synchronous>, transform_indices = @transform_2, window_bounds = array<i64: 64, 1>}, {pipeline_mode = #tpu.pipeline_mode<synchronous>, transform_indices = @transform_3, window_bounds = array<i64: 32, 64>}, {pipeline_mode = #tpu.pipeline_mode<synchronous>, transform_indices = @transform_4, window_bounds = array<i64: 32, 1>}, {pipeline_mode = #tpu.pipeline_mode<synchronous>, transform_indices = @transform_5, window_bounds = array<i64: 8, 32>}, {pipeline_mode = #tpu.pipeline_mode<synchronous>, transform_indices = @transform_6, window_bounds = array<i64: 8, 1>}, {transform_indices = @transform_7, window_bounds = array<i64: 8, 128>}]} {
    %c0 = arith.constant 0 : index
    %c0_0 = arith.constant 0 : index
    %0 = vector.load %arg1[%c0, %c0_0] : memref<11x128xbf16, #tpu.memory_space<vmem>>, vector<11x128xbf16>
    %c0_1 = arith.constant 0 : index
    %c0_2 = arith.constant 0 : index
    %1 = vector.load %arg2[%c0_1, %c0_2] : memref<64x11xbf16, #tpu.memory_space<vmem>>, vector<64x11xbf16>
    %cst = arith.constant dense<0.000000e+00> : vector<64x128xf32>
    %2 = tpu.matmul %1, %0, %cst {dimension_numbers = #tpu.dot_dimension_numbers<[1], [0], [0], [1], [0, 0, 1, 1], [], []>} : vector<64x11xbf16>, vector<11x128xbf16>, vector<64x128xf32> -> vector<64x128xf32>
    %c0_3 = arith.constant 0 : index
    %c0_4 = arith.constant 0 : index
    %3 = vector.load %arg3[%c0_3, %c0_4] : memref<64x1xf32, #tpu.memory_space<vmem>>, vector<64x1xf32>
    %4 = vector.broadcast %3 : vector<64x1xf32> to vector<64x128xf32>
    %5 = arith.addf %2, %4 : vector<64x128xf32>
    %cst_5 = arith.constant 0.000000e+00 : f32
    %6 = vector.broadcast %cst_5 : f32 to vector<64x128xf32>
    %7 = arith.maximumf %5, %6 : vector<64x128xf32>
    %8 = arith.truncf %7 : vector<64x128xf32> to vector<64x128xbf16>
    %c0_6 = arith.constant 0 : index
    %c0_7 = arith.constant 0 : index
    %9 = vector.load %arg4[%c0_6, %c0_7] : memref<32x64xbf16, #tpu.memory_space<vmem>>, vector<32x64xbf16>
    %cst_8 = arith.constant dense<0.000000e+00> : vector<32x128xf32>
    %10 = tpu.matmul %9, %8, %cst_8 {dimension_numbers = #tpu.dot_dimension_numbers<[1], [0], [0], [1], [0, 0, 1, 1], [], []>} : vector<32x64xbf16>, vector<64x128xbf16>, vector<32x128xf32> -> vector<32x128xf32>
    %c0_9 = arith.constant 0 : index
    %c0_10 = arith.constant 0 : index
    %11 = vector.load %arg5[%c0_9, %c0_10] : memref<32x1xf32, #tpu.memory_space<vmem>>, vector<32x1xf32>
    %12 = vector.broadcast %11 : vector<32x1xf32> to vector<32x128xf32>
    %13 = arith.addf %10, %12 : vector<32x128xf32>
    %cst_11 = arith.constant 0.000000e+00 : f32
    %14 = vector.broadcast %cst_11 : f32 to vector<32x128xf32>
    %15 = arith.maximumf %13, %14 : vector<32x128xf32>
    %16 = arith.truncf %15 : vector<32x128xf32> to vector<32x128xbf16>
    %c0_12 = arith.constant 0 : index
    %c0_13 = arith.constant 0 : index
    %17 = vector.load %arg6[%c0_12, %c0_13] : memref<8x32xbf16, #tpu.memory_space<vmem>>, vector<8x32xbf16>
    %cst_14 = arith.constant dense<0.000000e+00> : vector<8x128xf32>
    %18 = tpu.matmul %17, %16, %cst_14 {dimension_numbers = #tpu.dot_dimension_numbers<[1], [0], [0], [1], [0, 0, 1, 1], [], []>} : vector<8x32xbf16>, vector<32x128xbf16>, vector<8x128xf32> -> vector<8x128xf32>
    %c0_15 = arith.constant 0 : index
    %c0_16 = arith.constant 0 : index
    %19 = vector.load %arg7[%c0_15, %c0_16] : memref<8x1xf32, #tpu.memory_space<vmem>>, vector<8x1xf32>
    %20 = vector.broadcast %19 : vector<8x1xf32> to vector<8x128xf32>
    %21 = arith.addf %18, %20 : vector<8x128xf32>
    %c0_17 = arith.constant 0 : index
    %c0_18 = arith.constant 0 : index
    %22 = vector.load %arg8[%c0_17, %c0_18] : memref<8x128xf32, #tpu.memory_space<vmem>>, vector<8x128xf32>
    tpu.vector_store %arg8[%c0_17, %c0_18], %21 {strides = array<i32>} : memref<8x128xf32, #tpu.memory_space<vmem>>, vector<8x128xf32>,
    return
  }
  func.func @transform_0(%arg0: i32) -> (i32, i32) {
    %c0_i32 = arith.constant 0 : i32
    %c0_i32_0 = arith.constant 0 : i32
    return %c0_i32, %arg0 : i32, i32
  }
  func.func @transform_1(%arg0: i32) -> (i32, i32) {
    %c0_i32 = arith.constant 0 : i32
    %c0_i32_0 = arith.constant 0 : i32
    %c0_i32_1 = arith.constant 0 : i32
    return %c0_i32, %c0_i32_0 : i32, i32
  }
  func.func @transform_2(%arg0: i32) -> (i32, i32) {
    %c0_i32 = arith.constant 0 : i32
    %c0_i32_0 = arith.constant 0 : i32
    %c0_i32_1 = arith.constant 0 : i32
    return %c0_i32, %c0_i32_0 : i32, i32
  }
  func.func @transform_3(%arg0: i32) -> (i32, i32) {
    %c0_i32 = arith.constant 0 : i32
    %c0_i32_0 = arith.constant 0 : i32
    %c0_i32_1 = arith.constant 0 : i32
    return %c0_i32, %c0_i32_0 : i32, i32
  }
  func.func @transform_4(%arg0: i32) -> (i32, i32) {
    %c0_i32 = arith.constant 0 : i32
    %c0_i32_0 = arith.constant 0 : i32
    %c0_i32_1 = arith.constant 0 : i32
    return %c0_i32, %c0_i32_0 : i32, i32
  }
  func.func @transform_5(%arg0: i32) -> (i32, i32) {
    %c0_i32 = arith.constant 0 : i32
    %c0_i32_0 = arith.constant 0 : i32
    %c0_i32_1 = arith.constant 0 : i32
    return %c0_i32, %c0_i32_0 : i32, i32
  }
  func.func @transform_6(%arg0: i32) -> (i32, i32) {
    %c0_i32 = arith.constant 0 : i32
    %c0_i32_0 = arith.constant 0 : i32
    %c0_i32_1 = arith.constant 0 : i32
    return %c0_i32, %c0_i32_0 : i32, i32
  }
  func.func @transform_7(%arg0: i32) -> (i32, i32) {
    %c0_i32 = arith.constant 0 : i32
    %c0_i32_0 = arith.constant 0 : i32
    return %c0_i32, %arg0 : i32, i32
  }
}

</mosaic_0001>

<llo_original>
// kernel: net_forward.1
$region0: #{net_forward.1}
  #allocation0 [shape = 'u32[]', space=smem, size = 0x4, offset = 0x4, fixed_abs, tag = 'smem constant byte address 0x4 - core index']
  #allocation1 [shape = 'u32[144,128]{1,0:T(1,128)}', space=vmem, size = 0x12000, scoped, tag = 'internal scratch']
  %s0 = inlined_call_operand.vmem [shape: bf16[11,128], index: 0, kind: input, shape index: {}]
  %s1 = inlined_call_operand.vmem [shape: bf16[64,11], index: 1, kind: input, shape index: {}]
  %s2 = inlined_call_operand.vmem [shape: f32[64,1], index: 2, kind: input, shape index: {}]
  %s3 = inlined_call_operand.vmem [shape: bf16[32,64], index: 3, kind: input, shape index: {}]
  %s4 = inlined_call_operand.vmem [shape: f32[32,1], index: 4, kind: input, shape index: {}]
  %s5 = inlined_call_operand.vmem [shape: bf16[8,32], index: 5, kind: input, shape index: {}]
  %s6 = inlined_call_operand.vmem [shape: f32[8,1], index: 6, kind: input, shape index: {}]
  %s7 = inlined_call_operand.vmem [shape: f32[8,128], index: 7, kind: output, shape index: {}]
  %s8 = sld [smem:[#allocation0]]
  $region38: #{net_forward.1} parent=0
    _
  %s10 = ssub.s32 1, %s8
  %s11 = scalar_select 0, %s10, %s8
  // Predicated region
  $region2: #{net_forward.1} parent=0 // pred_check
    _
  $region3: #{net_forward.1} parent=0 // pred_check_branch
    %13 = sbr.rel (0) target = $region5
  $region4: #{net_forward.1} parent=0 // pred_region
    _
  $region5: #{net_forward.1} parent=0 // pred_fallthru
    _
  // Predicated region
  $region6: #{net_forward.1} parent=0 // pred_check
    _
  $region7: #{net_forward.1} parent=0 // pred_check_branch
    %15 = sbr.rel (0) target = $region9
  $region8: #{net_forward.1} parent=0 // pred_region
    _
  $region9: #{net_forward.1} parent=0 // pred_fallthru
    _
  // Predicated region
  $region10: #{net_forward.1} parent=0 // pred_check
    _
  $region11: #{net_forward.1} parent=0 // pred_check_branch
    %17 = sbr.rel (0) target = $region13
  $region12: #{net_forward.1} parent=0 // pred_region
    _
  $region13: #{net_forward.1} parent=0 // pred_fallthru
    _
  // Predicated region
  $region14: #{net_forward.1} parent=0 // pred_check
    _
  $region15: #{net_forward.1} parent=0 // pred_check_branch
    %19 = sbr.rel (0) target = $region17
  $region16: #{net_forward.1} parent=0 // pred_region
    _
  $region17: #{net_forward.1} parent=0 // pred_fallthru
    _
  // Predicated region
  $region18: #{net_forward.1} parent=0 // pred_check
    _
  $region19: #{net_forward.1} parent=0 // pred_check_branch
    %21 = sbr.rel (0) target = $region21
  $region20: #{net_forward.1} parent=0 // pred_region
    _
  $region21: #{net_forward.1} parent=0 // pred_fallthru
    _
  // Predicated region
  $region22: #{net_forward.1} parent=0 // pred_check
    _
  $region23: #{net_forward.1} parent=0 // pred_check_branch
    %23 = sbr.rel (0) target = $region25
  $region24: #{net_forward.1} parent=0 // pred_region
    _
  $region25: #{net_forward.1} parent=0 // pred_fallthru
    _
  // Predicated region
  $region26: #{net_forward.1} parent=0 // pred_check
    _
  $region27: #{net_forward.1} parent=0 // pred_check_branch
    %25 = sbr.rel (0) target = $region29
  $region28: #{net_forward.1} parent=0 // pred_region
    _
  $region29: #{net_forward.1} parent=0 // pred_fallthru
    _
  %v27 = vld [vmem:[%s0] sm:$0xf]
  %v28 = vld [vmem:[%s0 + $0x4] sm:$0x3]
  %v29 = vld [vmem:[%s1] sm:$0xf]
  %v30 = vld [vmem:[%s1 + $0x4] sm:$0xf]
  %v31 = vld [vmem:[%s1 + $0x8] sm:$0xf]
  %v32 = vld [vmem:[%s1 + $0xc] sm:$0xf]
  %v33 = vld [vmem:[%s1 + $0x10] sm:$0xf]
  %v34 = vld [vmem:[%s1 + $0x14] sm:$0xf]
  %v35 = vld [vmem:[%s1 + $0x18] sm:$0xf]
  %v36 = vld [vmem:[%s1 + $0x1c] sm:$0xf]
  %v37 = vld [vmem:[%s2] sm:$0xff]
  %v38 = vld [vmem:[%s2 + $0x8] sm:$0xff]
  %v39 = vld [vmem:[%s2 + $0x10] sm:$0xff]
  %v40 = vld [vmem:[%s2 + $0x18] sm:$0xff]
  %v41 = vld [vmem:[%s2 + $0x20] sm:$0xff]
  %v42 = vld [vmem:[%s2 + $0x28] sm:$0xff]
  %v43 = vld [vmem:[%s2 + $0x30] sm:$0xff]
  %v44 = vld [vmem:[%s2 + $0x38] sm:$0xff]
  %46 = vset.pattern.permute.xlu0 0
  %47 = vperm.xlu0 %46, %v37
  %v48 = vpop.permute.xlu0 %47
  %51 = vset.pattern.permute.xlu0 0
  %52 = vperm.xlu0 %51, %v38
  %v53 = vpop.permute.xlu0 %52
  %56 = vset.pattern.permute.xlu0 0
  %57 = vperm.xlu0 %56, %v39
  %v58 = vpop.permute.xlu0 %57
  %61 = vset.pattern.permute.xlu0 0
  %62 = vperm.xlu0 %61, %v40
  %v63 = vpop.permute.xlu0 %62
  %66 = vset.pattern.permute.xlu0 0
  %67 = vperm.xlu0 %66, %v41
  %v68 = vpop.permute.xlu0 %67
  %71 = vset.pattern.permute.xlu0 0
  %72 = vperm.xlu0 %71, %v42
  %v73 = vpop.permute.xlu0 %72
  %76 = vset.pattern.permute.xlu0 0
  %77 = vperm.xlu0 %76, %v43
  %v78 = vpop.permute.xlu0 %77
  %81 = vset.pattern.permute.xlu0 0
  %82 = vperm.xlu0 %81, %v44
  %v83 = vpop.permute.xlu0 %82
  %v93 = vunpack.c.l.b16 %v29
  %v94 = vunpack.c.l.b16 %v30
  %v95 = vunpack.c.l.b16 %v31
  %v96 = vunpack.c.l.b16 %v32
  %v97 = vunpack.c.l.b16 %v33
  %v98 = vunpack.c.l.b16 %v34
  %v99 = vunpack.c.l.b16 %v35
  %v100 = vunpack.c.l.b16 %v36
  %v101 = vpack.c.b16 %v94, %v93
  %v102 = vpack.c.b16 %v96, %v95
  %v103 = vpack.c.b16 %v98, %v97
  %v104 = vpack.c.b16 %v100, %v99
  %v107 = vunpack.c.l.b16 %v27
  %v108 = vunpack.c.l.b16 %v28
  %v109 = vpack.c.b16 %v108, %v107
  %vm110 = vcmask 89088
  %v112 = vsel %vm110, %v101, 0
  %v115 = vsel %vm110, %v102, 0
  %v118 = vsel %vm110, %v103, 0
  %v121 = vsel %vm110, %v104, 0
  %vm123 = vcmask 1044480
  %vm124 = vcmask 1045504
  %v125 = vsel %vm123, 4294967295, 65535
  %v126 = vsel %vm124, %v125, 0
  %v128 = vand.u32 %v109, %v126
  %130 = vmatprep.subr.bf16.mxu0 0
  %131 = vmatpush1.bf16.msra.mxu0 0
  %132 = vmatprep.subr.bf16.mxu0 0
  %133 = vmatpush1.bf16.msra.mxu0 0
  %134 = vmatprep.subr.bf16.mxu0 0
  %135 = vmatpush1.bf16.msra.mxu0 0
  %136 = vmatprep.subr.bf16.mxu0 0
  %137 = vmatpush1.bf16.msra.mxu0 0
  %138 = vmatprep.subr.bf16.mxu0 0
  %139 = vmatpush1.bf16.msra.mxu0 0
  %140 = vmatprep.subr.bf16.mxu0 0
  %141 = vmatpush1.bf16.msra.mxu0 0
  %142 = vmatprep.subr.bf16.mxu0 0
  %143 = vmatpush1.bf16.msra.mxu0 0
  %144 = vmatprep.subr.bf16.mxu0 0
  %145 = vmatpush1.bf16.msra.mxu0 %v128
  %146 = vmatprep.subr.bf16.mxu0 0
  %147 = vmatpush2.bf16.msra.mxu0 0
  %148 = vmatprep.subr.bf16.mxu0 0
  %149 = vmatpush2.bf16.msra.mxu0 0
  %150 = vmatprep.subr.bf16.mxu0 0
  %151 = vmatpush2.bf16.msra.mxu0 0
  %152 = vmatprep.subr.bf16.mxu0 0
  %153 = vmatpush2.bf16.msra.mxu0 0
  %154 = vmatprep.subr.bf16.mxu0 0
  %155 = vmatpush2.bf16.msra.mxu0 0
  %156 = vmatprep.subr.bf16.mxu0 0
  %157 = vmatpush2.bf16.msra.mxu0 0
  %158 = vmatprep.subr.bf16.mxu0 0
  %159 = vmatpush2.bf16.msra.mxu0 0
  %160 = vmatprep.subr.bf16.mxu0 0
  %161 = vmatpush2.bf16.msra.mxu0 0
  %162 = vmatprep.mubr.bf16.mxu0 0
  %163 = vmatmul.mubr.bf16.gmra.mxu0 %v112
  %v164 = vpop.f32.mrf.mxu0
  %v165 = vadd.f32 %v48, %v164
  %v166 = vpop.f32.mrf.mxu0
  %v167 = vpop.f32.mrf.mxu0
  %v168 = vadd.f32 %v53, %v167
  %v169 = vpop.f32.mrf.mxu0
  %170 = vmatprep.mubr.bf16.mxu0 0
  %171 = vmatmul.mubr.bf16.gmra.mxu0 %v115
  %v172 = vpop.f32.mrf.mxu0
  %v173 = vadd.f32 %v58, %v172
  %v174 = vpop.f32.mrf.mxu0
  %v175 = vpop.f32.mrf.mxu0
  %v176 = vadd.f32 %v63, %v175
  %v177 = vpop.f32.mrf.mxu0
  %178 = vmatprep.mubr.bf16.mxu0 0
  %179 = vmatmul.mubr.bf16.gmra.mxu0 %v118
  %v180 = vpop.f32.mrf.mxu0
  %v181 = vadd.f32 %v68, %v180
  %v182 = vpop.f32.mrf.mxu0
  %v183 = vpop.f32.mrf.mxu0
  %v184 = vadd.f32 %v73, %v183
  %v185 = vpop.f32.mrf.mxu0
  %186 = vmatprep.mubr.bf16.mxu0 0
  %187 = vmatmul.mubr.bf16.gmra.mxu0 %v121
  %v188 = vpop.f32.mrf.mxu0
  %v189 = vadd.f32 %v78, %v188
  %v190 = vpop.f32.mrf.mxu0
  %v191 = vpop.f32.mrf.mxu0
  %v192 = vadd.f32 %v83, %v191
  %v193 = vpop.f32.mrf.mxu0
  %194 = vdwg.mxu0
  %v195 = vmax.f32 %v165, 0.0
  %v196 = vmax.f32 %v168, 0.0
  %v197 = vmax.f32 %v173, 0.0
  %v198 = vmax.f32 %v176, 0.0
  %v199 = vmax.f32 %v181, 0.0
  %v200 = vmax.f32 %v184, 0.0
  %v201 = vmax.f32 %v189, 0.0
  %v202 = vmax.f32 %v192, 0.0
  %v203 = vpack.c.bf16 %v196, %v195
  %v204 = vpack.c.bf16 %v198, %v197
  %v205 = vpack.c.bf16 %v200, %v199
  %v206 = vpack.c.bf16 %v202, %v201
  %v207 = vld [vmem:[%s3] sm:$0xf]
  %v208 = vld [vmem:[%s3 + $0x4] sm:$0xf]
  %v209 = vld [vmem:[%s3 + $0x8] sm:$0xf]
  %v210 = vld [vmem:[%s3 + $0xc] sm:$0xf]
  %v211 = vld [vmem:[%s4] sm:$0xff]
  %v212 = vld [vmem:[%s4 + $0x8] sm:$0xff]
  %v213 = vld [vmem:[%s4 + $0x10] sm:$0xff]
  %v214 = vld [vmem:[%s4 + $0x18] sm:$0xff]
  %216 = vset.pattern.permute.xlu0 0
  %217 = vperm.xlu0 %216, %v211
  %v218 = vpop.permute.xlu0 %217
  %221 = vset.pattern.permute.xlu0 0
  %222 = vperm.xlu0 %221, %v212
  %v223 = vpop.permute.xlu0 %222
  %226 = vset.pattern.permute.xlu0 0
  %227 = vperm.xlu0 %226, %v213
  %v228 = vpop.permute.xlu0 %227
  %231 = vset.pattern.permute.xlu0 0
  %232 = vperm.xlu0 %231, %v214
  %v233 = vpop.permute.xlu0 %232
  %v239 = vunpack.c.l.b16 %v207
  %v240 = vunpack.c.l.b16 %v208
  %v241 = vunpack.c.l.b16 %v209
  %v242 = vunpack.c.l.b16 %v210
  %v243 = vpack.c.b16 %v240, %v239
  %v244 = vpack.c.b16 %v242, %v241
  %vm245 = vcmask 523264
  %v247 = vsel %vm245, %v243, 0
  %v250 = vsel %vm245, %v244, 0
  %252 = vmatprep.subr.bf16.mxu0 0
  %253 = vmatpush1.bf16.msra.mxu0 0
  %254 = vmatprep.subr.bf16.mxu0 0
  %255 = vmatpush1.bf16.msra.mxu0 0
  %256 = vmatprep.subr.bf16.mxu0 0
  %257 = vmatpush1.bf16.msra.mxu0 0
  %258 = vmatprep.subr.bf16.mxu0 0
  %259 = vmatpush1.bf16.msra.mxu0 0
  %260 = vmatprep.subr.bf16.mxu0 0
  %261 = vmatpush1.bf16.msra.mxu0 %v206
  %262 = vmatprep.subr.bf16.mxu0 0
  %263 = vmatpush1.bf16.msra.mxu0 %v205
  %264 = vmatprep.subr.bf16.mxu0 0
  %265 = vmatpush1.bf16.msra.mxu0 %v204
  %266 = vmatprep.subr.bf16.mxu0 0
  %267 = vmatpush1.bf16.msra.mxu0 %v203
  %268 = vmatprep.subr.bf16.mxu0 0
  %269 = vmatpush2.bf16.msra.mxu0 0
  %270 = vmatprep.subr.bf16.mxu0 0
  %271 = vmatpush2.bf16.msra.mxu0 0
  %272 = vmatprep.subr.bf16.mxu0 0
  %273 = vmatpush2.bf16.msra.mxu0 0
  %274 = vmatprep.subr.bf16.mxu0 0
  %275 = vmatpush2.bf16.msra.mxu0 0
  %276 = vmatprep.subr.bf16.mxu0 0
  %277 = vmatpush2.bf16.msra.mxu0 0
  %278 = vmatprep.subr.bf16.mxu0 0
  %279 = vmatpush2.bf16.msra.mxu0 0
  %280 = vmatprep.subr.bf16.mxu0 0
  %281 = vmatpush2.bf16.msra.mxu0 0
  %282 = vmatprep.subr.bf16.mxu0 0
  %283 = vmatpush2.bf16.msra.mxu0 0
  %284 = vmatprep.mubr.bf16.mxu0 0
  %285 = vmatmul.mubr.bf16.gmra.mxu0 %v247
  %v286 = vpop.f32.mrf.mxu0
  %v287 = vadd.f32 %v218, %v286
  %v288 = vpop.f32.mrf.mxu0
  %v289 = vpop.f32.mrf.mxu0
  %v290 = vadd.f32 %v223, %v289
  %v291 = vpop.f32.mrf.mxu0
  %292 = vmatprep.mubr.bf16.mxu0 0
  %293 = vmatmul.mubr.bf16.gmra.mxu0 %v250
  %v294 = vpop.f32.mrf.mxu0
  %v295 = vadd.f32 %v228, %v294
  %v296 = vpop.f32.mrf.mxu0
  %v297 = vpop.f32.mrf.mxu0
  %v298 = vadd.f32 %v233, %v297
  %v299 = vpop.f32.mrf.mxu0
  %300 = vdwg.mxu0
  %v301 = vmax.f32 %v287, 0.0
  %v302 = vmax.f32 %v290, 0.0
  %v303 = vmax.f32 %v295, 0.0
  %v304 = vmax.f32 %v298, 0.0
  %v305 = vpack.c.bf16 %v302, %v301
  %v306 = vpack.c.bf16 %v304, %v303
  %v307 = vld [vmem:[%s5] sm:$0xf]
  %v308 = vld [vmem:[%s6] sm:$0xff]
  %310 = vset.pattern.permute.xlu0 0
  %311 = vperm.xlu0 %310, %v308
  %v312 = vpop.permute.xlu0 %311
  %vm314 = vcmask 261120
  %v316 = vsel %vm314, %v307, 0
  %318 = vmatprep.subr.bf16.mxu0 0
  %319 = vmatpush1.bf16.msra.mxu0 0
  %320 = vmatprep.subr.bf16.mxu0 0
  %321 = vmatpush1.bf16.msra.mxu0 0
  %322 = vmatprep.subr.bf16.mxu0 0
  %323 = vmatpush1.bf16.msra.mxu0 0
  %324 = vmatprep.subr.bf16.mxu0 0
  %325 = vmatpush1.bf16.msra.mxu0 0
  %326 = vmatprep.subr.bf16.mxu0 0
  %327 = vmatpush1.bf16.msra.mxu0 0
  %328 = vmatprep.subr.bf16.mxu0 0
  %329 = vmatpush1.bf16.msra.mxu0 0
  %330 = vmatprep.subr.bf16.mxu0 0
  %331 = vmatpush1.bf16.msra.mxu0 %v306
  %332 = vmatprep.subr.bf16.mxu0 0
  %333 = vmatpush1.bf16.msra.mxu0 %v305
  %334 = vmatprep.subr.bf16.mxu0 0
  %335 = vmatpush2.bf16.msra.mxu0 0
  %336 = vmatprep.subr.bf16.mxu0 0
  %337 = vmatpush2.bf16.msra.mxu0 0
  %338 = vmatprep.subr.bf16.mxu0 0
  %339 = vmatpush2.bf16.msra.mxu0 0
  %340 = vmatprep.subr.bf16.mxu0 0
  %341 = vmatpush2.bf16.msra.mxu0 0
  %342 = vmatprep.subr.bf16.mxu0 0
  %343 = vmatpush2.bf16.msra.mxu0 0
  %344 = vmatprep.subr.bf16.mxu0 0
  %345 = vmatpush2.bf16.msra.mxu0 0
  %346 = vmatprep.subr.bf16.mxu0 0
  %347 = vmatpush2.bf16.msra.mxu0 0
  %348 = vmatprep.subr.bf16.mxu0 0
  %349 = vmatpush2.bf16.msra.mxu0 0
  %350 = vmatprep.mubr.bf16.mxu0 0
  %351 = vmatmul.mubr.bf16.gmra.mxu0 %v316
  %v352 = vpop.f32.mrf.mxu0
  %v353 = vadd.f32 %v312, %v352
  %v354 = vpop.f32.mrf.mxu0
  %v355 = vpop.f32.mrf.mxu0
  %v356 = vpop.f32.mrf.mxu0
  %357 = vdwg.mxu0
  %358 = vst [vmem:[%s7] sm:$0xff] %v353
  // Predicated region
  $region30: #{net_forward.1} parent=0 // pred_check
    _
  $region31: #{net_forward.1} parent=0 // pred_check_branch
    %360 = sbr.rel (0) target = $region33
  $region32: #{net_forward.1} parent=0 // pred_region
    _
  $region33: #{net_forward.1} parent=0 // pred_fallthru
    _
  // Predicated region
  $region34: #{net_forward.1} parent=0 // pred_check
    _
  $region35: #{net_forward.1} parent=0 // pred_check_branch
    %362 = sbr.rel (0) target = $region37
  $region36: #{net_forward.1} parent=0 // pred_region
    _
  $region37: #{net_forward.1} parent=0 // pred_fallthru
    _

</llo_original>
